<compile_context>
chip_gen: v7x
topology: tpu7x:2x2x1
jax: 0.10.0
libtpu: 0.0.40
codegen_flags: <defaults>
</compile_context>

<pallas_src>
import math

import jax
import jax.numpy as jnp
from jax.experimental import pallas as pl
from jax.experimental.pallas import tpu as pltpu


def _build_pe_table(d_model: int, max_len: int = 1051) -> jnp.ndarray:
    """Deterministic sin/cos positional-encoding buffer, matching torch init."""
    # The reference PyTorch module also requires an even d_model (its 1::2
    # assignment raises for odd d_model), so we assert rather than diverge.
    assert d_model % 2 == 0, "PositionalEncoding requires an even d_model"
    position = jnp.arange(0, max_len, dtype=jnp.float32)[:, None]            # (max_len, 1)
    div_term = jnp.exp(
        jnp.arange(0, d_model, 2, dtype=jnp.float32) * (-math.log(10000.0) / d_model)
    )                                                                         # (d_model//2,)
    pe = jnp.zeros((max_len, d_model), dtype=jnp.float32)
    pe = pe.at[:, 0::2].set(jnp.sin(position * div_term))
    pe = pe.at[:, 1::2].set(jnp.cos(position * div_term))
    return pe                                                                 # (max_len, d_model)


def _pos_enc_kernel(x_ref, pe_ref, o_ref):
    # Same dtype for x and pe (pe is cast in the wrapper), so on v6e/v7x a bf16
    # input stays bf16 on the VPU.  Broadcasting handles both the (ts, D) tiled
    # path and the (B, tl) + (1, tl) flattened path.
    o_ref[...] = (x_ref[...] + pe_ref[...]).astype(o_ref.dtype)


def _vmem_plan():
    """Return (tile_budget_bytes, vmem_limit_bytes) sized per TPU generation.

    v5e/v6e have 128 MiB physical VMEM, v7x has 64 MiB per TensorCore; one
    hard-coded constant cannot be right for both, so size from the hardware.
    """
    try:
        phys = int(pltpu.get_tpu_info().vmem_capacity_bytes)
    except Exception:
        phys = 64 << 20  # assume the smallest (v7x-class) part if query unavailable
    phys = max(phys, 32 << 20)
    # ~55% of physical VMEM for the resident double-buffered pipeline tiles;
    # the remainder is headroom for compiler scratch.
    tile_budget = (phys * 11) // 20
    vmem_limit = int(min(phys - (8 << 20), tile_budget + (16 << 20)))
    return int(tile_budget), vmem_limit


def _choose_seq_tile(S: int, D: int, itemsize: int, tile_budget: int) -> int:
    """Largest sequence tile (multiple of 8) whose resident VMEM fits the budget.

    Resident tiles per grid step: x + pe + out (all in x.dtype, pe already cast),
    each double-buffered -> 6 tiles of (ts, D).
    """
    bytes_per_row = 6 * D * itemsize
    ts = max(8, tile_budget // bytes_per_row)
    if ts >= S:
        return S
    return max(8, (ts // 8) * 8)   # sublane-aligned tiles when tiling the sequence


def _pos_enc_tiled(x: jnp.ndarray, pe: jnp.ndarray,
                   tile_budget: int, vmem_limit: int) -> jnp.ndarray:
    """Path for D % 128 == 0 (lane-dense last dim already)."""
    B, S, D = x.shape
    ts = _choose_seq_tile(S, D, jnp.dtype(x.dtype).itemsize, tile_budget)

    if ts == S:
        # Whole sequence fits one tile: 1-D grid over batch so v7x megacore can
        # shard the batch across both TensorCores.  pe's block index is constant,
        # so it is fetched once (per core) and reused for every batch element.
        return pl.pallas_call(
            _pos_enc_kernel,
            out_shape=jax.ShapeDtypeStruct((B, S, D), x.dtype),
            grid_spec=pltpu.PrefetchScalarGridSpec(
                num_scalar_prefetch=0,
                grid=(B,),
                in_specs=[
                    pl.BlockSpec((None, S, D), lambda b: (b, 0, 0)),
                    pl.BlockSpec((S, D), lambda b: (0, 0)),
                ],
                out_specs=pl.BlockSpec((None, S, D), lambda b: (b, 0, 0)),
            ),
            compiler_params=pltpu.CompilerParams(
                dimension_semantics=("parallel",),
                vmem_limit_bytes=vmem_limit,
            ),
        )(x, pe)

    n_s = pl.cdiv(S, ts)
    return pl.pallas_call(
        _pos_enc_kernel,
        out_shape=jax.ShapeDtypeStruct((B, S, D), x.dtype),
        grid_spec=pltpu.PrefetchScalarGridSpec(
            num_scalar_prefetch=0,
            # Batch innermost: pe's block index is constant across it, so pe is
            # DMA'd once per sequence tile and reused for every batch element.
            grid=(n_s, B),
            in_specs=[
                pl.BlockSpec((None, ts, D), lambda s, b: (b, s, 0)),
                pl.BlockSpec((ts, D), lambda s, b: (s, 0)),
            ],
            out_specs=pl.BlockSpec((None, ts, D), lambda s, b: (b, s, 0)),
        ),
        compiler_params=pltpu.CompilerParams(
            dimension_semantics=("parallel", "parallel"),
            vmem_limit_bytes=vmem_limit,
        ),
    )(x, pe)


def _pos_enc_flat(x: jnp.ndarray, pe: jnp.ndarray,
                  tile_budget: int, vmem_limit: int) -> jnp.ndarray:
    """Path for small / non-128-multiple D: flatten (S, D) onto the lane axis.

    Presents a lane-dense output (last dim a multiple of 128 or the full extent)
    so stores are unmasked vst instead of masked partial stores.
    """
    B, S, D = x.shape
    L = S * D
    x2 = x.reshape(B, L)          # contiguous row-major reshape: free
    pe2 = pe.reshape(1, L)

    itemsize = jnp.dtype(x.dtype).itemsize
    # Resident bytes per lane column: x + out (B sublanes each) + pe (1 sublane),
    # each double-buffered.
    bytes_per_lane = (4 * B + 2) * itemsize
    tl = max(128, tile_budget // bytes_per_lane)
    if tl >= L:
        tl = L
    else:
        tl = (tl // 128) * 128
    n_l = pl.cdiv(L, tl)

    out2 = pl.pallas_call(
        _pos_enc_kernel,
        out_shape=jax.ShapeDtypeStruct((B, L), x.dtype),
        grid_spec=pltpu.PrefetchScalarGridSpec(
            num_scalar_prefetch=0,
            grid=(n_l,),
            in_specs=[
                pl.BlockSpec((B, tl), lambda l: (0, l)),
                pl.BlockSpec((1, tl), lambda l: (0, l)),
            ],
            out_specs=pl.BlockSpec((B, tl), lambda l: (0, l)),
        ),
        compiler_params=pltpu.CompilerParams(
            dimension_semantics=("parallel",),
            vmem_limit_bytes=vmem_limit,
        ),
    )(x2, pe2)
    return out2.reshape(B, S, D)


def positional_encoding(x: jnp.ndarray, pe_table: jnp.ndarray) -> jnp.ndarray:
    """x: (B, S, D); pe_table: (max_len, D). Returns x + pe_table[:S] (broadcast over B)."""
    B, S, D = x.shape
    max_len, d_model = pe_table.shape
    assert D == d_model, "d_model mismatch between x and pe table"
    assert S <= max_len, "sequence length exceeds max_len of the pe buffer"

    # One fused slice+cast in the wrapper: dtype-exact VMEM accounting, halved
    # pe traffic for bf16 inputs, and x/pe boundary tiles always stay aligned.
    pe = pe_table[:S].astype(x.dtype)

    tile_budget, vmem_limit = _vmem_plan()

    if D % 128 == 0:
        return _pos_enc_tiled(x, pe, tile_budget, vmem_limit)
    return _pos_enc_flat(x, pe, tile_budget, vmem_limit)


if __name__ == "__main__":
    MAX_LEN = 1051
    key = jax.random.PRNGKey(0)

    # Small shapes consistent with the module's forward: (batch, seq, d_model).
    # D=32 exercises the lane-dense flattened path.
    B, S, D = 2, 8, 32
    x = jax.random.normal(key, (B, S, D), dtype=jnp.float32)
    pe_table = _build_pe_table(D, MAX_LEN)
    out = positional_encoding(x, pe_table)
    out = jax.block_until_ready(out)
    ref = x + pe_table[None, :S, :]
    assert out.shape == (B, S, D)
    assert jnp.allclose(out, ref, atol=1e-6), "mismatch vs reference (flat path)"

    # Secondary check: D=128 exercises the 3D lane-aligned path (single-tile,
    # batch-parallel grid).
    B2, S2, D2 = 2, 8, 128
    x2 = jax.random.normal(jax.random.PRNGKey(1), (B2, S2, D2), dtype=jnp.float32)
    pe_table2 = _build_pe_table(D2, MAX_LEN)
    out2 = positional_encoding(x2, pe_table2)
    out2 = jax.block_until_ready(out2)
    ref2 = x2 + pe_table2[None, :S2, :]
    assert out2.shape == (B2, S2, D2)
    assert jnp.allclose(out2, ref2, atol=1e-6), "mismatch vs reference (tiled path)"

    print("KERNEL_OK")
</pallas_src>

<mosaic_0001>
module attributes {stable_mosaic.version = 11 : i64} {
  func.func @_pos_enc_kernel(%arg0: i32, %arg1: memref<2x256xf32, #tpu.memory_space<vmem>>, %arg2: memref<1x256xf32, #tpu.memory_space<vmem>>, %arg3: memref<2x256xf32, #tpu.memory_space<vmem>>) attributes {dimension_semantics = [#tpu.dimension_semantics<parallel>], iteration_bounds = array<i64: 1>, scalar_prefetch = 0 : i64, scratch_operands = 0 : i64, tpu.core_type = #tpu.core_type<tc>, window_params = [{transform_indices = @transform_0, window_bounds = array<i64: 2, 256>}, {transform_indices = @transform_1, window_bounds = array<i64: 1, 256>}, {transform_indices = @transform_2, window_bounds = array<i64: 2, 256>}]} {
    %c0 = arith.constant 0 : index
    %c0_0 = arith.constant 0 : index
    %0 = vector.load %arg1[%c0, %c0_0] : memref<2x256xf32, #tpu.memory_space<vmem>>, vector<2x256xf32>
    %c0_1 = arith.constant 0 : index
    %c0_2 = arith.constant 0 : index
    %1 = vector.load %arg2[%c0_1, %c0_2] : memref<1x256xf32, #tpu.memory_space<vmem>>, vector<1x256xf32>
    %2 = vector.broadcast %1 : vector<1x256xf32> to vector<2x256xf32>
    %3 = arith.addf %0, %2 : vector<2x256xf32>
    %c0_3 = arith.constant 0 : index
    %c0_4 = arith.constant 0 : index
    %4 = vector.load %arg3[%c0_3, %c0_4] : memref<2x256xf32, #tpu.memory_space<vmem>>, vector<2x256xf32>
    tpu.vector_store %arg3[%c0_3, %c0_4], %3 {strides = array<i32>} : memref<2x256xf32, #tpu.memory_space<vmem>>, vector<2x256xf32>,
    return
  }
  func.func @transform_0(%arg0: i32) -> (i32, i32) {
    %c0_i32 = arith.constant 0 : i32
    %c0_i32_0 = arith.constant 0 : i32
    return %c0_i32, %arg0 : i32, i32
  }
  func.func @transform_1(%arg0: i32) -> (i32, i32) {
    %c0_i32 = arith.constant 0 : i32
    %c0_i32_0 = arith.constant 0 : i32
    return %c0_i32, %arg0 : i32, i32
  }
  func.func @transform_2(%arg0: i32) -> (i32, i32) {
    %c0_i32 = arith.constant 0 : i32
    %c0_i32_0 = arith.constant 0 : i32
    return %c0_i32, %arg0 : i32, i32
  }
}

</mosaic_0001>

<llo_original>
// kernel: tpu_custom_call.1
$region0: #{tpu_custom_call.1}
  #allocation0 [shape = 'u32[]', space=smem, size = 0x4, offset = 0x4, fixed_abs, tag = 'smem constant byte address 0x4 - core index']
  #allocation1 [shape = 'u32[144,128]{1,0:T(1,128)}', space=vmem, size = 0x12000, scoped, tag = 'internal scratch']
  %s0 = inlined_call_operand.hbm [shape: f32[2,256], index: 0, kind: input, shape index: {}]
  %s1 = inlined_call_operand.vmem [shape: f32[1,256], index: 1, kind: input, shape index: {}]
  %s2 = inlined_call_operand.hbm [shape: f32[2,256], index: 2, kind: output, shape index: {}]
  %s3 = sld [smem:[#allocation0]]
  $region22: #{tpu_custom_call.1} parent=0
    _
  %s5 = ssub.s32 1, %s3
  %s6 = scalar_select 0, %s5, %s3
  $region1: #{tpu_custom_call.1} parent=0
    #allocation2 [shape = 'u8[2048]{0}', space=vmem, size = 0x800, scoped, tag = 'input window, operand 0, single buffered']
    #allocation3 [shape = 's32[1]{0}', space=sflag, size = 0x4, scoped, tag = 'scoped memory for tpu_custom_call.1']
    #allocation4 [shape = 's32[1]{0}', space=sflag, size = 0x4, scoped, tag = 'scoped memory for tpu_custom_call.1']
    #allocation5 [shape = 'u8[2048]{0}', space=vmem, size = 0x800, scoped, tag = 'output window, operand 0, single buffered']
    %7 = vsyncpa [#allocation3], 0
    %8 = vsyncpa [#allocation4], 0
    // Predicated region
    $region2: #{tpu_custom_call.1} parent=1 // pred_check
      _
    $region3: #{tpu_custom_call.1} parent=1 // pred_check_branch
      %10 = sbr.rel (0) target = $region5
    $region4: #{tpu_custom_call.1} parent=1 // pred_region
      %s12 = ssub.s32 64, 64
      %13 = vsyncadd [#allocation3], %s12
      %s15 = sshll.u32 [#allocation2], 4
      %s16 = int_to_ptr.vmem [resolvable:$true] %s15
      %18 = dma.hbm_to_vmem [thread:$0]  %s0, 64, %s16, [#allocation3]
    $region5: #{tpu_custom_call.1} parent=1 // pred_fallthru
      _
    // Predicated region
    $region6: #{tpu_custom_call.1} parent=1 // pred_check
      _
    $region7: #{tpu_custom_call.1} parent=1 // pred_check_branch
      %20 = sbr.rel (0) target = $region9
    $region8: #{tpu_custom_call.1} parent=1 // pred_region
      _
    $region9: #{tpu_custom_call.1} parent=1 // pred_fallthru
      _
    // Predicated region
    $region10: #{tpu_custom_call.1} parent=1 // pred_check
      _
    $region11: #{tpu_custom_call.1} parent=1 // pred_check_branch
      %22 = sbr.rel (0) target = $region13
    $region12: #{tpu_custom_call.1} parent=1 // pred_region
      %23 = dma.done [#allocation3], 64
    $region13: #{tpu_custom_call.1} parent=1 // pred_fallthru
      _
    %v24 = vld [vmem:[#allocation2] sm:$0xf]
    %v25 = vld [vmem:[%s1] sm:$0x3]
    %v27 = vlaneseq
    %v28 = vshrl.u32 %v27, 7
    %v29 = vsub.s32 0, %v28
    %v30 = vrot.slane %v25, %v29
    %v31 = vlaneseq
    %v32 = vshrl.u32 %v31, 7
    %v33 = vsub.s32 1, %v32
    %v34 = vrot.slane %v25, %v33
    %v35 = vcombine.low %v30, %v34
    %v37 = vunpack.c.l.s4 1983009808
    %v38 = vunpack.c.0.s8 %v37
    %v39 = vlaneseq
    %v40 = vshrl.u32 %v39, 7
    %v41 = vsub.s32 %v38, %v40
    %v42 = vrot.slane %v35, %v41
    %v44 = vadd.f32 %v24, %v42
    %45 = vst [vmem:[#allocation5] sm:$0xf] %v44
    // Predicated region
    $region14: #{tpu_custom_call.1} parent=1 // pred_check
      _
    $region15: #{tpu_custom_call.1} parent=1 // pred_check_branch
      %47 = sbr.rel (0) target = $region17
    $region16: #{tpu_custom_call.1} parent=1 // pred_region
      %s49 = ssub.s32 64, 64
      %50 = vsyncadd [#allocation4], %s49
      %s52 = sshll.u32 [#allocation5], 4
      %s53 = int_to_ptr.vmem [resolvable:$true] %s52
      %55 = dma.vmem_to_hbm [thread:$0]  %s53, 64, %s2, [#allocation4]
    $region17: #{tpu_custom_call.1} parent=1 // pred_fallthru
      _
    // Predicated region
    $region18: #{tpu_custom_call.1} parent=1 // pred_check
      _
    $region19: #{tpu_custom_call.1} parent=1 // pred_check_branch
      %57 = sbr.rel (0) target = $region21
    $region20: #{tpu_custom_call.1} parent=1 // pred_region
      %58 = dma.done [#allocation4], 64
    $region21: #{tpu_custom_call.1} parent=1 // pred_fallthru
      _
    %59 = vsyncpa [#allocation3], 1
    %60 = vsyncpa [#allocation4], 1

</llo_original>
